<compile_context>
chip_gen: v7x
topology: tpu7x:2x2x1
jax: 0.10.0
libtpu: 0.0.40
codegen_flags: <defaults>
</compile_context>

<pallas_src>
import functools

import jax
import jax.numpy as jnp
from jax.experimental import pallas as pl
from jax.experimental.pallas import tpu as pltpu

# Problem constants (from the PyTorch module / its example input).
CIN, COUT, K, STRIDE, PAD = 12, 8, 3, 3, 1
H_IN, W_IN = 11, 21
MIN_V, MAX_V = 0.1, 0.2

HP, WP = H_IN - 1, W_IN - 1                 # maxpool(2, stride=1) output: (10, 20)
H_OUT = (HP - 1) * STRIDE - 2 * PAD + K     # 28
W_OUT = (WP - 1) * STRIDE - 2 * PAD + K     # 58

N_VALID = COUT * K * K                      # 72 useful output rows (oc, kh, kw)
M_PAD = 128                                 # sublane-padded output rows (full tile)
K_DIM = CIN + 1                             # 13 = channels + ones row (bias fold)
K_PAD = 16                                  # contraction dim padded to 2 f32 sublane tiles
N_LANES = 256                               # Hp*Wp = 200 padded to a 128-multiple of lanes


def _matmul_clamp_kernel(w_ref, a_ref, o_ref, *, min_v, max_v):
    """Conv-transpose core as one MXU matmul + clamp (bias folded into the matmul).

    w_ref: (128, 16)  rows = flattened (oc, kh, kw) taps (72 valid), col 12 = bias, rest 0
    a_ref: (16, 256)  rows 0..11 = pooled channels over flattened Hp*Wp lanes,
                      row 12 = ones (bias), rest 0
    o_ref: (128, 256) clamped per-(tap, input-pixel) contributions, lane dense
    """
    y = jnp.dot(w_ref[...], a_ref[...], preferred_element_type=jnp.float32)
    o_ref[...] = jnp.clip(y, min_v, max_v)


def prepare_params(weight, bias):
    """Precompute (once) the transposed, padded weight with the bias folded in."""
    w_flat = weight.reshape(CIN, N_VALID).astype(jnp.float32)            # (12, 72)
    w_pad = jnp.zeros((M_PAD, K_PAD), jnp.float32)
    w_pad = w_pad.at[:N_VALID, :CIN].set(w_flat.T)                       # (72, 12)
    w_pad = w_pad.at[:N_VALID, CIN].set(
        jnp.repeat(bias.astype(jnp.float32), K * K))                     # bias column
    return w_pad


@jax.jit
def model_forward(x_nchw, w_pad):
    """x_nchw: (1, Cin, H, W); w_pad: (128, 16) from prepare_params."""
    # Shapes are module constants; fail loudly (at trace time) on anything else.
    assert x_nchw.shape == (1, CIN, H_IN, W_IN), x_nchw.shape

    xp = x_nchw[0].astype(jnp.float32)                                   # (12, 11, 21)

    # MaxPool2d(kernel_size=2, stride=1) on the natural NCHW layout (no transpose).
    v = jnp.maximum(jnp.maximum(xp[:, :-1, :-1], xp[:, :-1, 1:]),
                    jnp.maximum(xp[:, 1:, :-1], xp[:, 1:, 1:]))          # (12, 10, 20)
    # TODO(synk): Dropout implemented as identity (inference semantics); training-mode
    # stochastic masking is not reproduced.

    # Lane-dense activation tile: spatial (Hp*Wp = 200) on lanes, ones row folds the bias.
    act = jnp.concatenate(
        [v.reshape(CIN, HP * WP), jnp.ones((1, HP * WP), jnp.float32)], axis=0)
    act = jnp.pad(act, ((0, K_PAD - K_DIM), (0, N_LANES - HP * WP)))     # (16, 256)

    kernel = functools.partial(_matmul_clamp_kernel, min_v=MIN_V, max_v=MAX_V)
    out = pl.pallas_call(
        kernel,
        out_shape=jax.ShapeDtypeStruct((M_PAD, N_LANES), jnp.float32),
        in_specs=[
            pl.BlockSpec(memory_space=pltpu.MemorySpace.VMEM),
            pl.BlockSpec(memory_space=pltpu.MemorySpace.VMEM),
        ],
        out_specs=pl.BlockSpec(memory_space=pltpu.MemorySpace.VMEM),
        cost_estimate=pl.CostEstimate(
            flops=2 * M_PAD * K_PAD * N_LANES,
            transcendentals=0,
            bytes_accessed=4 * (M_PAD * K_PAD + K_PAD * N_LANES + M_PAD * N_LANES),
        ),
    )(w_pad, act)

    # Stride-3 pixel-shuffle scatter + padding=1 crop, fused after the kernel by XLA.
    y = out[:N_VALID, :HP * WP].reshape(COUT, K, K, HP, WP)              # (oc,kh,kw,ih,iw)
    y = jnp.transpose(y, (0, 3, 1, 4, 2)).reshape(COUT, HP * K, WP * K)  # (8, 30, 60)
    y = y[:, PAD:PAD + H_OUT, PAD:PAD + W_OUT]                           # (8, 28, 58)
    return y[None]                                                       # (1, 8, 28, 58)


def _reference_forward(x_nchw, weight, bias):
    """Pure-JAX reference (eval-mode dropout) for correctness checking."""
    xp = x_nchw[0]
    v1 = jnp.maximum(
        jnp.maximum(xp[:, :-1, :-1], xp[:, :-1, 1:]),
        jnp.maximum(xp[:, 1:, :-1], xp[:, 1:, 1:]),
    )                                                                    # (Cin, Hp, Wp)
    hp, wp = v1.shape[1], v1.shape[2]
    y = jnp.einsum('ihw,iokl->ohkwl', v1, weight)                        # (Cout,Hp,K,Wp,K)
    y = y.reshape(COUT, hp * K, wp * K)
    h_out = (hp - 1) * STRIDE - 2 * PAD + K
    w_out = (wp - 1) * STRIDE - 2 * PAD + K
    y = y[:, PAD:PAD + h_out, PAD:PAD + w_out] + bias[:, None, None]
    return jnp.clip(y, MIN_V, MAX_V)[None]


if __name__ == "__main__":
    key = jax.random.PRNGKey(0)
    kx, kw, kb = jax.random.split(key, 3)
    x = jax.random.normal(kx, (1, CIN, H_IN, W_IN), jnp.float32)
    weight = jax.random.normal(kw, (CIN, COUT, K, K), jnp.float32) * 0.1
    bias = jax.random.normal(kb, (COUT,), jnp.float32) * 0.1

    # Weight flatten/transpose/pad + bias fold hoisted out of the per-call hot path.
    w_pad = prepare_params(weight, bias)

    out = jax.block_until_ready(model_forward(x, w_pad))
    ref = jax.block_until_ready(_reference_forward(x, weight, bias))

    assert out.shape == (1, COUT, H_OUT, W_OUT), out.shape
    assert jnp.allclose(out, ref, atol=1e-5, rtol=1e-5), "mismatch vs JAX reference"
    print("KERNEL_OK")
</pallas_src>

<mosaic_0001>
module attributes {stable_mosaic.version = 11 : i64} {
  func.func @_matmul_clamp_kernel(%arg0: memref<128x16xf32, #tpu.memory_space<vmem>>, %arg1: memref<16x256xf32, #tpu.memory_space<vmem>>, %arg2: memref<128x256xf32, #tpu.memory_space<vmem>>) attributes {dimension_semantics = [], scalar_prefetch = 0 : i64, scratch_operands = 0 : i64, tpu.core_type = #tpu.core_type<tc>} {
    %c0 = arith.constant 0 : index
    %c0_0 = arith.constant 0 : index
    %0 = vector.load %arg0[%c0, %c0_0] : memref<128x16xf32, #tpu.memory_space<vmem>>, vector<128x16xf32>
    %c0_1 = arith.constant 0 : index
    %c0_2 = arith.constant 0 : index
    %1 = vector.load %arg1[%c0_1, %c0_2] : memref<16x256xf32, #tpu.memory_space<vmem>>, vector<16x256xf32>
    %cst = arith.constant dense<0.000000e+00> : vector<128x256xf32>
    %2 = tpu.matmul %0, %1, %cst {dimension_numbers = #tpu.dot_dimension_numbers<[1], [0], [0], [1], [0, 0, 1, 1], [], []>} : vector<128x16xf32>, vector<16x256xf32>, vector<128x256xf32> -> vector<128x256xf32>
    %cst_3 = arith.constant 1.000000e-01 : f32
    %cst_4 = arith.constant 2.000000e-01 : f32
    %3 = vector.broadcast %cst_3 : f32 to vector<128x256xf32>
    %4 = arith.maximumf %3, %2 : vector<128x256xf32>
    %5 = vector.broadcast %cst_4 : f32 to vector<128x256xf32>
    %6 = arith.minimumf %5, %4 : vector<128x256xf32>
    %c0_5 = arith.constant 0 : index
    %c0_6 = arith.constant 0 : index
    %7 = vector.load %arg2[%c0_5, %c0_6] : memref<128x256xf32, #tpu.memory_space<vmem>>, vector<128x256xf32>
    tpu.vector_store %arg2[%c0_5, %c0_6], %6 {strides = array<i32>} : memref<128x256xf32, #tpu.memory_space<vmem>>, vector<128x256xf32>,
    return
  }
}

</mosaic_0001>

<llo_original>
// kernel: model_forward.1
$region0: #{model_forward.1}
  #allocation0 [shape = 'u32[]', space=smem, size = 0x4, offset = 0x4, fixed_abs, tag = 'smem constant byte address 0x4 - core index']
  #allocation1 [shape = 'u32[144,128]{1,0:T(1,128)}', space=vmem, size = 0x12000, scoped, tag = 'internal scratch']
  %s0 = inlined_call_operand.vmem [shape: f32[128,16], index: 0, kind: input, shape index: {}]
  %s1 = inlined_call_operand.vmem [shape: f32[16,256], index: 1, kind: input, shape index: {}]
  %s2 = inlined_call_operand.vmem [shape: f32[128,256], index: 2, kind: output, shape index: {}]
  %s3 = sld [smem:[#allocation0]]
  $region18: #{model_forward.1} parent=0
    _
  %s5 = ssub.s32 1, %s3
  %s6 = scalar_select 0, %s5, %s3
  // Predicated region
  $region2: #{model_forward.1} parent=0 // pred_check
    _
  $region3: #{model_forward.1} parent=0 // pred_check_branch
    %8 = sbr.rel (0) target = $region5
  $region4: #{model_forward.1} parent=0 // pred_region
    _
  $region5: #{model_forward.1} parent=0 // pred_fallthru
    _
  // Predicated region
  $region6: #{model_forward.1} parent=0 // pred_check
    _
  $region7: #{model_forward.1} parent=0 // pred_check_branch
    %10 = sbr.rel (0) target = $region9
  $region8: #{model_forward.1} parent=0 // pred_region
    _
  $region9: #{model_forward.1} parent=0 // pred_fallthru
    _
  %v11 = vld [vmem:[%s0] sm:$0xff]
  %v12 = vld [vmem:[%s0 + $0x8] sm:$0xff]
  %v13 = vld [vmem:[%s0 + $0x10] sm:$0xff]
  %v14 = vld [vmem:[%s0 + $0x18] sm:$0xff]
  %v15 = vld [vmem:[%s0 + $0x20] sm:$0xff]
  %v16 = vld [vmem:[%s0 + $0x28] sm:$0xff]
  %v17 = vld [vmem:[%s0 + $0x30] sm:$0xff]
  %v18 = vld [vmem:[%s0 + $0x38] sm:$0xff]
  %v19 = vld [vmem:[%s0 + $0x40] sm:$0xff]
  %v20 = vld [vmem:[%s0 + $0x48] sm:$0xff]
  %v21 = vld [vmem:[%s0 + $0x50] sm:$0xff]
  %v22 = vld [vmem:[%s0 + $0x58] sm:$0xff]
  %v23 = vld [vmem:[%s0 + $0x60] sm:$0xff]
  %v24 = vld [vmem:[%s0 + $0x68] sm:$0xff]
  %v25 = vld [vmem:[%s0 + $0x70] sm:$0xff]
  %v26 = vld [vmem:[%s0 + $0x78] sm:$0xff]
  %v27 = vld [vmem:[%s1] sm:$0xff]
  %v28 = vld [vmem:[%s1 + $0x8] sm:$0xff]
  %v29 = vld [vmem:[%s1 + $0x10] sm:$0xff]
  %v30 = vld [vmem:[%s1 + $0x18] sm:$0xff]
  %vm31 = vcmask 130048
  %v33 = vsel %vm31, %v11, 0
  %v36 = vsel %vm31, %v12, 0
  %v39 = vsel %vm31, %v13, 0
  %v42 = vsel %vm31, %v14, 0
  %v45 = vsel %vm31, %v15, 0
  %v48 = vsel %vm31, %v16, 0
  %v51 = vsel %vm31, %v17, 0
  %v54 = vsel %vm31, %v18, 0
  %v57 = vsel %vm31, %v19, 0
  %v60 = vsel %vm31, %v20, 0
  %v63 = vsel %vm31, %v21, 0
  %v66 = vsel %vm31, %v22, 0
  %v69 = vsel %vm31, %v23, 0
  %v72 = vsel %vm31, %v24, 0
  %v75 = vsel %vm31, %v25, 0
  %v78 = vsel %vm31, %v26, 0
  %80 = vmatprep.subr.mxu0 %v28
  %81 = vmatpush1.msra.mxu0 %v27
  %82 = vmatprep.subr.mxu0 %v30
  %83 = vmatpush1.msra.mxu0 %v29
  %84 = vmatprep.subr.mxu0 0.0
  %85 = vmatpush1.msra.mxu0 0.0
  %86 = vmatprep.subr.mxu0 0.0
  %87 = vmatpush1.msra.mxu0 0.0
  %88 = vmatprep.subr.mxu0 0.0
  %89 = vmatpush1.msra.mxu0 0.0
  %90 = vmatprep.subr.mxu0 0.0
  %91 = vmatpush1.msra.mxu0 0.0
  %92 = vmatprep.subr.mxu0 0.0
  %93 = vmatpush1.msra.mxu0 0.0
  %94 = vmatprep.subr.mxu0 0.0
  %95 = vmatpush1.msra.mxu0 0.0
  %96 = vmatprep.subr.mxu0 0.0
  %97 = vmatpush1.msra.mxu0 0.0
  %98 = vmatprep.subr.mxu0 0.0
  %99 = vmatpush1.msra.mxu0 0.0
  %100 = vmatprep.subr.mxu0 0.0
  %101 = vmatpush1.msra.mxu0 0.0
  %102 = vmatprep.subr.mxu0 0.0
  %103 = vmatpush1.msra.mxu0 0.0
  %104 = vmatprep.subr.mxu0 0.0
  %105 = vmatpush1.msra.mxu0 0.0
  %106 = vmatprep.subr.mxu0 0.0
  %107 = vmatpush1.msra.mxu0 0.0
  %108 = vmatprep.subr.mxu0 0.0
  %109 = vmatpush1.msra.mxu0 0.0
  %110 = vmatprep.subr.mxu0 0.0
  %111 = vmatpush1.msra.mxu0 0.0
  %112 = vmatprep.subr.mxu0 0.0
  %113 = vmatpush1.msra.mxu0 0.0
  %114 = vmatprep.subr.mxu0 0.0
  %115 = vmatpush1.msra.mxu0 0.0
  %116 = vmatprep.subr.mxu0 0.0
  %117 = vmatpush1.msra.mxu0 0.0
  %118 = vmatprep.subr.mxu0 0.0
  %119 = vmatpush1.msra.mxu0 0.0
  %120 = vmatprep.subr.mxu0 0.0
  %121 = vmatpush1.msra.mxu0 0.0
  %122 = vmatprep.subr.mxu0 0.0
  %123 = vmatpush1.msra.mxu0 0.0
  %124 = vmatprep.subr.mxu0 0.0
  %125 = vmatpush1.msra.mxu0 0.0
  %126 = vmatprep.subr.mxu0 0.0
  %127 = vmatpush1.msra.mxu0 0.0
  %128 = vmatprep.subr.mxu0 0.0
  %129 = vmatpush1.msra.mxu0 0.0
  %130 = vmatprep.subr.mxu0 0.0
  %131 = vmatpush1.msra.mxu0 0.0
  %132 = vmatprep.subr.mxu0 0.0
  %133 = vmatpush1.msra.mxu0 0.0
  %134 = vmatprep.subr.mxu0 0.0
  %135 = vmatpush1.msra.mxu0 0.0
  %136 = vmatprep.subr.mxu0 0.0
  %137 = vmatpush1.msra.mxu0 0.0
  %138 = vmatprep.subr.mxu0 0.0
  %139 = vmatpush1.msra.mxu0 0.0
  %140 = vmatprep.subr.mxu0 0.0
  %141 = vmatpush1.msra.mxu0 0.0
  %142 = vmatprep.subr.mxu0 0.0
  %143 = vmatpush1.msra.mxu0 0.0
  %144 = vmatprep.mubr.f32.mxu0 0.0
  %145 = vmatmul.mubr.f32.gmra.mrb[0].mxu0 %v33
  %v146 = vpop.f32.mrb[0].mxu0
  %v147 = vadd.f32 0.0, %v146
  %v148 = vpop.f32.mrb[0].mxu0
  %v149 = vadd.f32 0.0, %v148
  %150 = vmatprep.mubr.f32.mxu0 0.0
  %151 = vmatmul.mubr.f32.gmra.mrb[0].mxu0 %v36
  %v152 = vpop.f32.mrb[0].mxu0
  %v153 = vadd.f32 0.0, %v152
  %v154 = vpop.f32.mrb[0].mxu0
  %v155 = vadd.f32 0.0, %v154
  %156 = vmatprep.mubr.f32.mxu0 0.0
  %157 = vmatmul.mubr.f32.gmra.mrb[0].mxu0 %v39
  %v158 = vpop.f32.mrb[0].mxu0
  %v159 = vadd.f32 0.0, %v158
  %v160 = vpop.f32.mrb[0].mxu0
  %v161 = vadd.f32 0.0, %v160
  %162 = vmatprep.mubr.f32.mxu0 0.0
  %163 = vmatmul.mubr.f32.gmra.mrb[0].mxu0 %v42
  %v164 = vpop.f32.mrb[0].mxu0
  %v165 = vadd.f32 0.0, %v164
  %v166 = vpop.f32.mrb[0].mxu0
  %v167 = vadd.f32 0.0, %v166
  %168 = vmatprep.mubr.f32.mxu0 0.0
  %169 = vmatmul.mubr.f32.gmra.mrb[0].mxu0 %v45
  %v170 = vpop.f32.mrb[0].mxu0
  %v171 = vadd.f32 0.0, %v170
  %v172 = vpop.f32.mrb[0].mxu0
  %v173 = vadd.f32 0.0, %v172
  %174 = vmatprep.mubr.f32.mxu0 0.0
  %175 = vmatmul.mubr.f32.gmra.mrb[0].mxu0 %v48
  %v176 = vpop.f32.mrb[0].mxu0
  %v177 = vadd.f32 0.0, %v176
  %v178 = vpop.f32.mrb[0].mxu0
  %v179 = vadd.f32 0.0, %v178
  %180 = vmatprep.mubr.f32.mxu0 0.0
  %181 = vmatmul.mubr.f32.gmra.mrb[0].mxu0 %v51
  %v182 = vpop.f32.mrb[0].mxu0
  %v183 = vadd.f32 0.0, %v182
  %v184 = vpop.f32.mrb[0].mxu0
  %v185 = vadd.f32 0.0, %v184
  %186 = vmatprep.mubr.f32.mxu0 0.0
  %187 = vmatmul.mubr.f32.gmra.mrb[0].mxu0 %v54
  %v188 = vpop.f32.mrb[0].mxu0
  %v189 = vadd.f32 0.0, %v188
  %v190 = vpop.f32.mrb[0].mxu0
  %v191 = vadd.f32 0.0, %v190
  %192 = vmatprep.mubr.f32.mxu0 0.0
  %193 = vmatmul.mubr.f32.gmra.mrb[0].mxu0 %v57
  %v194 = vpop.f32.mrb[0].mxu0
  %v195 = vadd.f32 0.0, %v194
  %v196 = vpop.f32.mrb[0].mxu0
  %v197 = vadd.f32 0.0, %v196
  %198 = vmatprep.mubr.f32.mxu0 0.0
  %199 = vmatmul.mubr.f32.gmra.mrb[0].mxu0 %v60
  %v200 = vpop.f32.mrb[0].mxu0
  %v201 = vadd.f32 0.0, %v200
  %v202 = vpop.f32.mrb[0].mxu0
  %v203 = vadd.f32 0.0, %v202
  %204 = vmatprep.mubr.f32.mxu0 0.0
  %205 = vmatmul.mubr.f32.gmra.mrb[0].mxu0 %v63
  %v206 = vpop.f32.mrb[0].mxu0
  %v207 = vadd.f32 0.0, %v206
  %v208 = vpop.f32.mrb[0].mxu0
  %v209 = vadd.f32 0.0, %v208
  %210 = vmatprep.mubr.f32.mxu0 0.0
  %211 = vmatmul.mubr.f32.gmra.mrb[0].mxu0 %v66
  %v212 = vpop.f32.mrb[0].mxu0
  %v213 = vadd.f32 0.0, %v212
  %v214 = vpop.f32.mrb[0].mxu0
  %v215 = vadd.f32 0.0, %v214
  %216 = vmatprep.mubr.f32.mxu0 0.0
  %217 = vmatmul.mubr.f32.gmra.mrb[0].mxu0 %v69
  %v218 = vpop.f32.mrb[0].mxu0
  %v219 = vadd.f32 0.0, %v218
  %v220 = vpop.f32.mrb[0].mxu0
  %v221 = vadd.f32 0.0, %v220
  %222 = vmatprep.mubr.f32.mxu0 0.0
  %223 = vmatmul.mubr.f32.gmra.mrb[0].mxu0 %v72
  %v224 = vpop.f32.mrb[0].mxu0
  %v225 = vadd.f32 0.0, %v224
  %v226 = vpop.f32.mrb[0].mxu0
  %v227 = vadd.f32 0.0, %v226
  %228 = vmatprep.mubr.f32.mxu0 0.0
  %229 = vmatmul.mubr.f32.gmra.mrb[0].mxu0 %v75
  %v230 = vpop.f32.mrb[0].mxu0
  %v231 = vadd.f32 0.0, %v230
  %v232 = vpop.f32.mrb[0].mxu0
  %v233 = vadd.f32 0.0, %v232
  %234 = vmatprep.mubr.f32.mxu0 0.0
  %235 = vmatmul.mubr.f32.gmra.mrb[0].mxu0 %v78
  %v236 = vpop.f32.mrb[0].mxu0
  %v237 = vadd.f32 0.0, %v236
  %v238 = vpop.f32.mrb[0].mxu0
  %v239 = vadd.f32 0.0, %v238
  %240 = vdwg.mxu0
  %v241 = vmax.f32 %v147, 0.1
  %v242 = vmax.f32 %v149, 0.1
  %v243 = vmax.f32 %v153, 0.1
  %v244 = vmax.f32 %v155, 0.1
  %v245 = vmax.f32 %v159, 0.1
  %v246 = vmax.f32 %v161, 0.1
  %v247 = vmax.f32 %v165, 0.1
  %v248 = vmax.f32 %v167, 0.1
  %v249 = vmax.f32 %v171, 0.1
  %v250 = vmax.f32 %v173, 0.1
  %v251 = vmax.f32 %v177, 0.1
  %v252 = vmax.f32 %v179, 0.1
  %v253 = vmax.f32 %v183, 0.1
  %v254 = vmax.f32 %v185, 0.1
  %v255 = vmax.f32 %v189, 0.1
  %v256 = vmax.f32 %v191, 0.1
  %v257 = vmax.f32 %v195, 0.1
  %v258 = vmax.f32 %v197, 0.1
  %v259 = vmax.f32 %v201, 0.1
  %v260 = vmax.f32 %v203, 0.1
  %v261 = vmax.f32 %v207, 0.1
  %v262 = vmax.f32 %v209, 0.1
  %v263 = vmax.f32 %v213, 0.1
  %v264 = vmax.f32 %v215, 0.1
  %v265 = vmax.f32 %v219, 0.1
  %v266 = vmax.f32 %v221, 0.1
  %v267 = vmax.f32 %v225, 0.1
  %v268 = vmax.f32 %v227, 0.1
  %v269 = vmax.f32 %v231, 0.1
  %v270 = vmax.f32 %v233, 0.1
  %v271 = vmax.f32 %v237, 0.1
  %v272 = vmax.f32 %v239, 0.1
  %v273 = vmin.f32 %v241, 0.2
  %v274 = vmin.f32 %v242, 0.2
  %v275 = vmin.f32 %v243, 0.2
  %v276 = vmin.f32 %v244, 0.2
  %v277 = vmin.f32 %v245, 0.2
  %v278 = vmin.f32 %v246, 0.2
  %v279 = vmin.f32 %v247, 0.2
  %v280 = vmin.f32 %v248, 0.2
  %v281 = vmin.f32 %v249, 0.2
  %v282 = vmin.f32 %v250, 0.2
  %v283 = vmin.f32 %v251, 0.2
  %v284 = vmin.f32 %v252, 0.2
  %v285 = vmin.f32 %v253, 0.2
  %v286 = vmin.f32 %v254, 0.2
  %v287 = vmin.f32 %v255, 0.2
  %v288 = vmin.f32 %v256, 0.2
  %v289 = vmin.f32 %v257, 0.2
  %v290 = vmin.f32 %v258, 0.2
  %v291 = vmin.f32 %v259, 0.2
  %v292 = vmin.f32 %v260, 0.2
  %v293 = vmin.f32 %v261, 0.2
  %v294 = vmin.f32 %v262, 0.2
  %v295 = vmin.f32 %v263, 0.2
  %v296 = vmin.f32 %v264, 0.2
  %v297 = vmin.f32 %v265, 0.2
  %v298 = vmin.f32 %v266, 0.2
  %v299 = vmin.f32 %v267, 0.2
  %v300 = vmin.f32 %v268, 0.2
  %v301 = vmin.f32 %v269, 0.2
  %v302 = vmin.f32 %v270, 0.2
  %v303 = vmin.f32 %v271, 0.2
  %v304 = vmin.f32 %v272, 0.2
  %305 = vst [vmem:[%s2] sm:$0xff] %v273
  %306 = vst [vmem:[%s2 + $0x8] sm:$0xff] %v274
  %307 = vst [vmem:[%s2 + $0x10] sm:$0xff] %v275
  %308 = vst [vmem:[%s2 + $0x18] sm:$0xff] %v276
  %309 = vst [vmem:[%s2 + $0x20] sm:$0xff] %v277
  %310 = vst [vmem:[%s2 + $0x28] sm:$0xff] %v278
  %311 = vst [vmem:[%s2 + $0x30] sm:$0xff] %v279
  %312 = vst [vmem:[%s2 + $0x38] sm:$0xff] %v280
  %313 = vst [vmem:[%s2 + $0x40] sm:$0xff] %v281
  %314 = vst [vmem:[%s2 + $0x48] sm:$0xff] %v282
  %315 = vst [vmem:[%s2 + $0x50] sm:$0xff] %v283
  %316 = vst [vmem:[%s2 + $0x58] sm:$0xff] %v284
  %317 = vst [vmem:[%s2 + $0x60] sm:$0xff] %v285
  %318 = vst [vmem:[%s2 + $0x68] sm:$0xff] %v286
  %319 = vst [vmem:[%s2 + $0x70] sm:$0xff] %v287
  %320 = vst [vmem:[%s2 + $0x78] sm:$0xff] %v288
  %321 = vst [vmem:[%s2 + $0x80] sm:$0xff] %v289
  %322 = vst [vmem:[%s2 + $0x88] sm:$0xff] %v290
  %323 = vst [vmem:[%s2 + $0x90] sm:$0xff] %v291
  %324 = vst [vmem:[%s2 + $0x98] sm:$0xff] %v292
  %325 = vst [vmem:[%s2 + $0xa0] sm:$0xff] %v293
  %326 = vst [vmem:[%s2 + $0xa8] sm:$0xff] %v294
  %327 = vst [vmem:[%s2 + $0xb0] sm:$0xff] %v295
  %328 = vst [vmem:[%s2 + $0xb8] sm:$0xff] %v296
  %329 = vst [vmem:[%s2 + $0xc0] sm:$0xff] %v297
  %330 = vst [vmem:[%s2 + $0xc8] sm:$0xff] %v298
  %331 = vst [vmem:[%s2 + $0xd0] sm:$0xff] %v299
  %332 = vst [vmem:[%s2 + $0xd8] sm:$0xff] %v300
  %333 = vst [vmem:[%s2 + $0xe0] sm:$0xff] %v301
  %334 = vst [vmem:[%s2 + $0xe8] sm:$0xff] %v302
  %335 = vst [vmem:[%s2 + $0xf0] sm:$0xff] %v303
  %336 = vst [vmem:[%s2 + $0xf8] sm:$0xff] %v304
  // Predicated region
  $region10: #{model_forward.1} parent=0 // pred_check
    _
  $region11: #{model_forward.1} parent=0 // pred_check_branch
    %338 = sbr.rel (0) target = $region13
  $region12: #{model_forward.1} parent=0 // pred_region
    _
  $region13: #{model_forward.1} parent=0 // pred_fallthru
    _
  // Predicated region
  $region14: #{model_forward.1} parent=0 // pred_check
    _
  $region15: #{model_forward.1} parent=0 // pred_check_branch
    %340 = sbr.rel (0) target = $region17
  $region16: #{model_forward.1} parent=0 // pred_region
    _
  $region17: #{model_forward.1} parent=0 // pred_fallthru
    _

</llo_original>
